<compile_context>
chip_gen: v5e
topology: v5e:2x2
jax: 0.10.0
libtpu: 0.0.40
codegen_flags: <defaults>
</compile_context>

<pallas_src>
import jax
import jax.numpy as jnp
from jax.experimental import pallas as pl
from jax.experimental.pallas import tpu as pltpu


def _mse_sum_kernel(v_ref, t_ref, o_ref):
    # v_ref, t_ref: (2,) f32 in SMEM. o_ref: (1,) f32 in SMEM.
    # Pure scalar-unit computation — 5 FLOPs, no vector pipeline involved.
    d0 = v_ref[0] - t_ref[0]
    d1 = v_ref[1] - t_ref[1]
    o_ref[0] = d0 * d0 + d1 * d1


def mse_loss_forward(v, t):
    """Pallas equivalent of MSELoss.forward: ((v.view(2,1) - t) ** 2).sum().

    v: any array with exactly 2 elements (mirrors v.view(2, 1));
    t: must be shape (2, 1) (as the PyTorch module assumes).
    Elementwise subtract / square / sum are layout-invariant, so flattening
    both operands to (2,) gives an identical result.
    """
    v = jnp.asarray(v, jnp.float32)
    t = jnp.asarray(t, jnp.float32)
    if v.size != 2:
        raise ValueError(f"v must have exactly 2 elements, got shape {v.shape}")
    if t.shape != (2, 1):
        # PyTorch would broadcast other shapes to (2, 2) and change the sum;
        # refuse rather than silently diverge.
        raise ValueError(f"t must have shape (2, 1), got {t.shape}")

    v_flat = v.reshape(2)
    t_flat = t.reshape(2)

    out = pl.pallas_call(
        _mse_sum_kernel,
        out_shape=jax.ShapeDtypeStruct((1,), jnp.float32),
        in_specs=[
            pl.BlockSpec(memory_space=pltpu.MemorySpace.SMEM),
            pl.BlockSpec(memory_space=pltpu.MemorySpace.SMEM),
        ],
        out_specs=pl.BlockSpec(memory_space=pltpu.MemorySpace.SMEM),
        cost_estimate=pl.CostEstimate(flops=5, transcendentals=0, bytes_accessed=20),
    )(v_flat, t_flat)
    return out[0]  # scalar, matching torch .sum()


if __name__ == "__main__":
    key = jax.random.PRNGKey(0)
    kv, kt = jax.random.split(key)
    # Shapes implied by forward: v has 2 elements (viewed as (2, 1)), t is (2, 1).
    v = jax.random.normal(kv, (2,), dtype=jnp.float32)
    t = jax.random.normal(kt, (2, 1), dtype=jnp.float32)

    loss = mse_loss_forward(v, t)
    jax.block_until_ready(loss)

    # Sanity check against plain-JAX reference of the PyTorch semantics.
    ref = jnp.sum((v.reshape(2, 1) - t) ** 2)
    assert jnp.allclose(loss, ref, rtol=1e-6, atol=1e-6)

    print("KERNEL_OK")
</pallas_src>

<mosaic_0001>
module attributes {stable_mosaic.version = 11 : i64} {
  func.func @_mse_sum_kernel(%arg0: memref<2xf32, #tpu.memory_space<smem>>, %arg1: memref<2xf32, #tpu.memory_space<smem>>, %arg2: memref<1xf32, #tpu.memory_space<smem>>) attributes {dimension_semantics = [], scalar_prefetch = 0 : i64, scratch_operands = 0 : i64, tpu.core_type = #tpu.core_type<tc>} {
    %c0 = arith.constant 0 : index
    %0 = memref.load %arg0[%c0] : memref<2xf32, #tpu.memory_space<smem>>
    %c0_0 = arith.constant 0 : index
    %1 = memref.load %arg1[%c0_0] : memref<2xf32, #tpu.memory_space<smem>>
    %2 = arith.subf %0, %1 : f32
    %c1 = arith.constant 1 : index
    %3 = memref.load %arg0[%c1] : memref<2xf32, #tpu.memory_space<smem>>
    %c1_1 = arith.constant 1 : index
    %4 = memref.load %arg1[%c1_1] : memref<2xf32, #tpu.memory_space<smem>>
    %5 = arith.subf %3, %4 : f32
    %6 = arith.mulf %2, %2 : f32
    %7 = arith.mulf %5, %5 : f32
    %8 = arith.addf %6, %7 : f32
    %c0_2 = arith.constant 0 : index
    %9 = memref.load %arg2[%c0_2] : memref<1xf32, #tpu.memory_space<smem>>
    memref.store %8, %arg2[%c0_2] : memref<1xf32, #tpu.memory_space<smem>>
    return
  }
}

</mosaic_0001>

<llo_original>
// kernel: tpu_custom_call.1
$region0: #{tpu_custom_call.1}
  #allocation0 [shape = 'u32[]', space=smem, size = 0x4, offset = 0x4, fixed_abs, tag = 'smem constant byte address 0x4 - core index']
  #allocation1 [shape = 'u32[72,128]{1,0:T(1,128)}', space=vmem, size = 0x9000, scoped, tag = 'internal scratch']
  %s0 = inlined_call_operand.hbm [shape: f32[2], index: 0, kind: input, shape index: {}]
  %s1 = inlined_call_operand.hbm [shape: f32[2], index: 1, kind: input, shape index: {}]
  %s2 = inlined_call_operand.hbm [shape: f32[1], index: 2, kind: output, shape index: {}]
  %s3 = sld [smem:[#allocation0]]
  $region26: #{tpu_custom_call.1} parent=0
    _
  %s5 = ssub.s32 1, %s3
  %s6 = scalar_select 0, %s5, %s3
  $region1: #{tpu_custom_call.1} parent=0
    #allocation2 [shape = 'u8[512]{0}', space=smem, size = 0x200, scoped, tag = 'input window, operand 0, single buffered']
    #allocation3 [shape = 's32[1]{0}', space=sflag, size = 0x4, scoped, tag = 'scoped memory for tpu_custom_call.1']
    #allocation4 [shape = 's32[1]{0}', space=sflag, size = 0x4, scoped, tag = 'scoped memory for tpu_custom_call.1']
    #allocation5 [shape = 'u8[512]{0}', space=smem, size = 0x200, scoped, tag = 'input window, operand 1, single buffered']
    #allocation6 [shape = 's32[1]{0}', space=sflag, size = 0x4, scoped, tag = 'scoped memory for tpu_custom_call.1']
    #allocation7 [shape = 'u8[512]{0}', space=smem, size = 0x200, scoped, tag = 'output window, operand 0, single buffered']
    %7 = vsyncpa [#allocation3], 0
    %8 = vsyncpa [#allocation6], 0
    %9 = vsyncpa [#allocation4], 0
    // Predicated region
    $region2: #{tpu_custom_call.1} parent=1 // pred_check
      _
    $region3: #{tpu_custom_call.1} parent=1 // pred_check_branch
      %11 = sbr.rel (0) target = $region5
    $region4: #{tpu_custom_call.1} parent=1 // pred_region
      %13 = vsyncadd [#allocation3], 0
      %s15 = sshll.u32 %s0, 4
      %s16 = int_to_ptr.hbm [resolvable:$true] %s15
      %18 = dma.hbm_to_smem %s16, 16, [#allocation2], [#allocation3]
    $region5: #{tpu_custom_call.1} parent=1 // pred_fallthru
      _
    // Predicated region
    $region6: #{tpu_custom_call.1} parent=1 // pred_check
      _
    $region7: #{tpu_custom_call.1} parent=1 // pred_check_branch
      %20 = sbr.rel (0) target = $region9
    $region8: #{tpu_custom_call.1} parent=1 // pred_region
      %22 = vsyncadd [#allocation6], 0
      %s24 = sshll.u32 %s1, 4
      %s25 = int_to_ptr.hbm [resolvable:$true] %s24
      %27 = dma.hbm_to_smem %s25, 16, [#allocation5], [#allocation6]
    $region9: #{tpu_custom_call.1} parent=1 // pred_fallthru
      _
    // Predicated region
    $region10: #{tpu_custom_call.1} parent=1 // pred_check
      _
    $region11: #{tpu_custom_call.1} parent=1 // pred_check_branch
      %29 = sbr.rel (0) target = $region13
    $region12: #{tpu_custom_call.1} parent=1 // pred_region
      %31 = dma.done [#allocation3], 16
    $region13: #{tpu_custom_call.1} parent=1 // pred_fallthru
      _
    // Predicated region
    $region14: #{tpu_custom_call.1} parent=1 // pred_check
      _
    $region15: #{tpu_custom_call.1} parent=1 // pred_check_branch
      %33 = sbr.rel (0) target = $region17
    $region16: #{tpu_custom_call.1} parent=1 // pred_region
      %35 = dma.done [#allocation6], 16
    $region17: #{tpu_custom_call.1} parent=1 // pred_fallthru
      _
    %36 = sfence
    %s37 = sld [smem:[#allocation2]]
    %s38 = sld [smem:[#allocation5]]
    %s39 = ssub.f32 %s37, %s38
    %s40 = sld [smem:[#allocation2 + $0x1]]
    %s41 = sld [smem:[#allocation5 + $0x1]]
    %s42 = ssub.f32 %s40, %s41
    %s43 = smul.f32 %s39, %s39
    %s44 = smul.f32 %s42, %s42
    %s45 = sadd.f32 %s43, %s44
    %s46 = scalar_lea.smem [#allocation7], 0
    %47 = sst [smem:[%s46]] %s45
    // Predicated region
    $region18: #{tpu_custom_call.1} parent=1 // pred_check
      _
    $region19: #{tpu_custom_call.1} parent=1 // pred_check_branch
      %49 = sbr.rel (0) target = $region21
    $region20: #{tpu_custom_call.1} parent=1 // pred_region
      %51 = vsyncadd [#allocation4], 0
      %s53 = sshll.u32 %s2, 4
      %s54 = int_to_ptr.hbm [resolvable:$true] %s53
      %56 = dma.smem_to_hbm [#allocation7], 16, %s54, [#allocation4]
    $region21: #{tpu_custom_call.1} parent=1 // pred_fallthru
      _
    // Predicated region
    $region22: #{tpu_custom_call.1} parent=1 // pred_check
      _
    $region23: #{tpu_custom_call.1} parent=1 // pred_check_branch
      %58 = sbr.rel (0) target = $region25
    $region24: #{tpu_custom_call.1} parent=1 // pred_region
      %60 = dma.done [#allocation4], 16
    $region25: #{tpu_custom_call.1} parent=1 // pred_fallthru
      _
    %61 = sfence
    %62 = vsyncpa [#allocation3], 1
    %63 = vsyncpa [#allocation6], 1
    %64 = vsyncpa [#allocation4], 1

</llo_original>
